<compile_context>
chip_gen: v7x
topology: tpu7x:2x2x1
jax: 0.10.0
libtpu: 0.0.40
codegen_flags: <defaults>
</compile_context>

<pallas_src>
import functools

import jax
import jax.numpy as jnp
from jax import lax
from jax.experimental import pallas as pl
from jax.experimental.pallas import tpu as pltpu

BN_EPS = 1e-5


def _round_up(n, m):
    return ((n + m - 1) // m) * m


def _device_kind():
    try:
        return jax.devices()[0].device_kind.lower()
    except Exception:
        return ""


_KIND = _device_kind()
_IS_V7 = "v7" in _KIND
# bf16 VPU/EUP only on v6e / v7x; keep activation math in f32 elsewhere (v5e has no bf16 VALU/EUP).
_ACT_DTYPE = jnp.bfloat16 if ("v6" in _KIND or "v7" in _KIND) else jnp.float32


def _vmem_capacity_bytes():
    try:
        return int(pltpu.get_tpu_info().vmem_capacity_bytes)
    except Exception:
        return (64 << 20) if _IS_V7 else (128 << 20)


_VMEM_CAP = _vmem_capacity_bytes()


def _activation(h, activation):
    if activation == "relu":
        return jnp.maximum(h, 0.0)
    if activation == "tanh":
        return jnp.tanh(h)
    if activation == "sigmoid":
        return jax.nn.sigmoid(h)
    if activation == "leaky_relu":
        return jnp.where(h >= 0.0, h, 0.01 * h)
    if activation == "elu":
        # clamp arg so expm1 never overflows on the (discarded) positive branch
        return jnp.where(h >= 0.0, h, jnp.expm1(jnp.minimum(h, 0.0)))
    return jnp.maximum(h, 0.0)  # default: relu (matches _get_activation fallback)


# --------------------------------------------------------------------------------------------------
# Parameters (PyTorch layout) and eval-mode BatchNorm fold
# --------------------------------------------------------------------------------------------------
def init_params(key, input_size, hidden_sizes, output_size):
    """Per hidden block: (W [h,prev], b [h], gamma, beta, running_mean, running_var [h]);
    then head (W [out,prev], b [out])."""
    params = []
    prev = input_size
    for hs in hidden_sizes:
        key, kw, kb, kg, kbe, km, kv = jax.random.split(key, 7)
        bound = 1.0 / (prev ** 0.5)
        w = jax.random.uniform(kw, (hs, prev), jnp.float32, -bound, bound)
        b = jax.random.uniform(kb, (hs,), jnp.float32, -bound, bound)
        gamma = 1.0 + 0.1 * jax.random.normal(kg, (hs,), jnp.float32)
        beta = 0.1 * jax.random.normal(kbe, (hs,), jnp.float32)
        rmean = 0.1 * jax.random.normal(km, (hs,), jnp.float32)
        rvar = 1.0 + 0.1 * jax.random.uniform(kv, (hs,), jnp.float32)
        params.append((w, b, gamma, beta, rmean, rvar))
        prev = hs
    key, kw, kb = jax.random.split(key, 3)
    bound = 1.0 / (prev ** 0.5)
    w = jax.random.uniform(kw, (output_size, prev), jnp.float32, -bound, bound)
    b = jax.random.uniform(kb, (output_size,), jnp.float32, -bound, bound)
    params.append((w, b))
    return params


def fold_params(params):
    """Fold eval-mode BatchNorm1d (affine over running stats) into the *following* Linear layer.
    BN sits after the activation and before the next Linear, so the fold is exact:
        W' = W * scale[None, :],  b' = b + W @ shift,
    with scale = gamma*rsqrt(var+eps), shift = beta - mean*scale of the preceding BN.
    Returns flat (W0,b0, ..., Wout,bout); W bf16 [out,in], b f32 [out,1].
    NOTE: if running_var is extremely small the folded bf16 weights can get large; this toy net's
    stats are well conditioned. Call this ONCE and reuse (hoisted out of the forward hot path)."""
    flat = []
    scale = None
    shift = None
    for layer in params[:-1]:
        w, b, gamma, beta, mean, var = layer
        if scale is not None:
            b = b + w @ shift
            w = w * scale[None, :]
        flat.append(w.astype(jnp.bfloat16))
        flat.append(b.reshape(-1, 1).astype(jnp.float32))
        s = gamma * jax.lax.rsqrt(var + BN_EPS)
        shift = beta - mean * s
        scale = s
    w, b = params[-1]
    if scale is not None:
        b = b + w @ shift
        w = w * scale[None, :]
    flat.append(w.astype(jnp.bfloat16))
    flat.append(b.reshape(-1, 1).astype(jnp.float32))
    return tuple(flat)


# --------------------------------------------------------------------------------------------------
# Fused kernel
# --------------------------------------------------------------------------------------------------
def _make_mlp_kernel(num_layers, activation, act_dtype, wide_head):
    """Params are (W0,b0, ..., Wout,bout); W bf16 [out,in], b f32 [out,1] (head bias [1,out] if
    wide_head). Activations live as [features, TB] with the batch tile on the lane axis."""

    def kernel(*refs):
        x_ref = refs[0]          # [input_size, TB] bf16 (batch on lanes, lane-dense DMA)
        out_ref = refs[-1]       # [out, TB] or [TB, out] f32
        p = refs[1:-1]

        # Layer 0: straight [h0, in] @ [in, TB] MXU feed, f32 accumulation.
        w, b = p[0], p[1]
        h = jnp.dot(w[...], x_ref[...], preferred_element_type=jnp.float32) + b[...]

        for layer in range(1, num_layers):
            # Activation of the previous layer's output (BN already folded into the next Linear).
            h = _activation(h.astype(act_dtype), activation).astype(jnp.bfloat16)
            w, b = p[2 * layer], p[2 * layer + 1]
            if layer == num_layers - 1 and wide_head:
                # Head emits a lane-dense [TB, out] slab: contract h's feature dim with w's input dim.
                h = lax.dot_general(h, w[...], (((0,), (1,)), ((), ())),
                                    preferred_element_type=jnp.float32) + b[...]
            else:
                h = jnp.dot(w[...], h, preferred_element_type=jnp.float32) + b[...]

        out_ref[...] = h.astype(out_ref.dtype)

    return kernel


def _vmem_bytes_estimate(param_shapes, input_size, output_size, tb, wide_head):
    """Padded-layout VMEM footprint: single-buffered params, double-buffered x/out, live activations."""
    total = 0
    for k in range(0, len(param_shapes), 2):
        o, i = param_shapes[k]
        total += _round_up(o, 16) * _round_up(i, 128) * 2       # bf16 weight (Buffered(1))
        bo, bi = param_shapes[k + 1]
        total += _round_up(bo, 8) * _round_up(bi, 128) * 4      # f32 bias, lane-padded
    total += 2 * _round_up(input_size, 16) * tb * 2             # x: double-buffered bf16
    if wide_head:
        total += 2 * tb * _round_up(output_size, 128) * 4       # out: double-buffered f32
    else:
        total += 2 * _round_up(output_size, 8) * tb * 4
    widest = max(s[0] for s in param_shapes[::2])
    total += 3 * _round_up(widest, 8) * tb * 4                  # live activation slabs
    return total


@functools.partial(jax.jit, static_argnames=("activation", "max_tile"))
def forward_folded(x, flat, activation="relu", max_tile=2048):
    """Pallas forward for GPUNeuralNetwork (eval mode). x: [batch, input_size] f32,
    flat: pre-folded params from fold_params()."""
    flat = tuple(flat)
    batch, input_size = x.shape
    output_size = flat[-2].shape[0]
    num_layers = len(flat) // 2
    wide_head = (output_size >= 128) and (num_layers > 1)

    # Batch tiling: as few lane-dense (multiple-of-128) steps as possible; >=2 steps on v7x so the
    # "parallel" batch axis shards across both TensorCores.
    steps = max(1, pl.cdiv(batch, max_tile))
    if _IS_V7 and batch >= 256:
        steps = max(steps, 2)
    tb = max(128, _round_up(pl.cdiv(batch, steps), 128))
    batch_pad = steps * tb

    # Pre-transpose x -> [input_size, batch_pad] bf16: lane-dense, contiguous per-step DMA.
    xt = x.astype(jnp.bfloat16).T
    if batch_pad != batch:
        xt = jnp.pad(xt, ((0, 0), (0, batch_pad - batch)))

    call_params = list(flat)
    if wide_head:
        call_params[-1] = flat[-1].reshape(1, -1)    # head bias as [1, out] for the [TB, out] layout

    in_specs = [pl.BlockSpec((input_size, tb), lambda i: (0, i))]
    for p_arr in call_params:
        # Constant index -> DMA'd once; single buffer (no wasted second pipeline buffer).
        in_specs.append(pl.BlockSpec(p_arr.shape, lambda i: (0, 0),
                                     pipeline_mode=pl.Buffered(1)))

    if wide_head:
        out_specs = pl.BlockSpec((tb, output_size), lambda i: (i, 0))
        out_shape = jax.ShapeDtypeStruct((batch_pad, output_size), jnp.float32)
    else:
        out_specs = pl.BlockSpec((output_size, tb), lambda i: (0, i))
        out_shape = jax.ShapeDtypeStruct((output_size, batch_pad), jnp.float32)

    # VMEM budget computed from actual padded sizes (v7x has only 64 MiB/TC; v5e/v6e 128 MiB).
    vmem_need = _vmem_bytes_estimate([p.shape for p in call_params],
                                     input_size, output_size, tb, wide_head)
    vmem_limit = int(min(_VMEM_CAP - (4 << 20), max(vmem_need + (16 << 20), 32 << 20)))
    # TODO(synk): for very large hidden layers (folded bf16 weights > ~40 MiB) switch to a K/N-tiled
    # inner pipeline (pltpu.emit_pipeline) and/or fp8 weight storage on v7x instead of full residency.

    kernel = _make_mlp_kernel(num_layers, activation, _ACT_DTYPE, wide_head)
    out_t = pl.pallas_call(
        kernel,
        out_shape=out_shape,
        grid_spec=pltpu.PrefetchScalarGridSpec(
            num_scalar_prefetch=0,
            grid=(steps,),
            in_specs=in_specs,
            out_specs=out_specs,
        ),
        compiler_params=pltpu.CompilerParams(
            dimension_semantics=("parallel",),
            vmem_limit_bytes=vmem_limit,
        ),
    )(xt, *call_params)

    if wide_head:
        return out_t[:batch]              # already [batch, out], lane-dense store in-kernel
    return out_t[:, :batch].T             # narrow head: tiny wrapper transpose


def gpu_neural_network_forward(x, params, activation="relu", max_tile=2048):
    """Convenience wrapper (folds BN every call). Hot loops should call fold_params() once and
    then forward_folded()."""
    return forward_folded(x, fold_params(params), activation=activation, max_tile=max_tile)


# --------------------------------------------------------------------------------------------------
# References
# --------------------------------------------------------------------------------------------------
def _reference_forward(x, params, activation="relu"):
    """Pure-JAX f32 eval-mode reference (exact module semantics)."""
    h = x.astype(jnp.float32)
    for layer in params[:-1]:
        w, b, gamma, beta, mean, var = layer
        h = h @ w.T + b
        h = _activation(h, activation)
        h = (h - mean) * jax.lax.rsqrt(var + BN_EPS) * gamma + beta
        # Dropout: identity in eval mode.
    w, b = params[-1]
    return h @ w.T + b


def _folded_reference(x, flat, activation="relu"):
    """Numerical replica of the kernel computation (folded BN, bf16 operands, f32 accumulation)."""
    num_layers = len(flat) // 2
    h = x.astype(jnp.bfloat16)
    for layer in range(num_layers):
        w, b = flat[2 * layer], flat[2 * layer + 1]
        h = jnp.dot(h, w.T, preferred_element_type=jnp.float32) + b.reshape(1, -1)
        if layer < num_layers - 1:
            h = _activation(h.astype(_ACT_DTYPE), activation).astype(jnp.bfloat16)
    return h


# TODO(synk): fit()/AdamW/GradScaler training loop and train-mode Dropout/BN-stat updates are out of
# scope for this forward-pass kernel (inference only).

if __name__ == "__main__":
    key = jax.random.PRNGKey(0)

    # --- Test 1: GPUNeuralNetwork(16, [32, 32], 1), eval-mode forward, small batch. ---
    input_size, hidden_sizes, output_size = 16, [32, 32], 1
    activation = "relu"
    key, kx, kp = jax.random.split(key, 3)
    params = init_params(kp, input_size, hidden_sizes, output_size)
    flat = fold_params(params)     # fold BN once (hoisted out of the hot path)

    batch = 8
    x = jax.random.normal(kx, (batch, input_size), dtype=jnp.float32)
    out = jax.block_until_ready(forward_folded(x, flat, activation=activation))
    assert out.shape == (batch, output_size)
    ref = _reference_forward(x, params, activation)
    assert jnp.allclose(out, ref, atol=5e-2, rtol=5e-2), "semantic mismatch vs f32 eval reference"
    rep = _folded_reference(x, flat, activation)
    assert jnp.allclose(out, rep, atol=5e-3, rtol=5e-3), "mismatch vs bf16 folded replica"

    # --- Test 2: larger batch -> multi-step "parallel" batch grid (padding + lane-dense tiles). ---
    key, kx2 = jax.random.split(key)
    batch2 = 2500
    x2 = jax.random.normal(kx2, (batch2, input_size), dtype=jnp.float32)
    out2 = jax.block_until_ready(forward_folded(x2, flat, activation=activation))
    assert out2.shape == (batch2, output_size)
    ref2 = _reference_forward(x2, params, activation)
    assert jnp.allclose(out2, ref2, atol=5e-2, rtol=5e-2), "grid-path mismatch vs f32 reference"

    # --- Test 3: wide head (output_size >= 128) -> [TB, out] lane-dense store, no wrapper .T. ---
    key, kx3, kp3 = jax.random.split(key, 3)
    params3 = init_params(kp3, 32, [64], 256)
    flat3 = fold_params(params3)
    x3 = jax.random.normal(kx3, (64, 32), dtype=jnp.float32)
    out3 = jax.block_until_ready(forward_folded(x3, flat3, activation=activation))
    assert out3.shape == (64, 256)
    ref3 = _reference_forward(x3, params3, activation)
    assert jnp.allclose(out3, ref3, atol=5e-2, rtol=5e-2), "wide-head mismatch vs f32 reference"

    print("KERNEL_OK")
</pallas_src>

<mosaic_0001>
module attributes {stable_mosaic.version = 11 : i64} {
  func.func @kernel(%arg0: i32, %arg1: memref<16x128xbf16, #tpu.memory_space<vmem>>, %arg2: memref<32x16xbf16, #tpu.memory_space<vmem>>, %arg3: memref<32x1xf32, #tpu.memory_space<vmem>>, %arg4: memref<32x32xbf16, #tpu.memory_space<vmem>>, %arg5: memref<32x1xf32, #tpu.memory_space<vmem>>, %arg6: memref<1x32xbf16, #tpu.memory_space<vmem>>, %arg7: memref<1x1xf32, #tpu.memory_space<vmem>>, %arg8: memref<1x128xf32, #tpu.memory_space<vmem>>) attributes {dimension_semantics = [#tpu.dimension_semantics<parallel>], iteration_bounds = array<i64: 1>, scalar_prefetch = 0 : i64, scratch_operands = 0 : i64, tpu.core_type = #tpu.core_type<tc>, window_params = [{transform_indices = @transform_0, window_bounds = array<i64: 16, 128>}, {pipeline_mode = #tpu.pipeline_mode<synchronous>, transform_indices = @transform_1, window_bounds = array<i64: 32, 16>}, {pipeline_mode = #tpu.pipeline_mode<synchronous>, transform_indices = @transform_2, window_bounds = array<i64: 32, 1>}, {pipeline_mode = #tpu.pipeline_mode<synchronous>, transform_indices = @transform_3, window_bounds = array<i64: 32, 32>}, {pipeline_mode = #tpu.pipeline_mode<synchronous>, transform_indices = @transform_4, window_bounds = array<i64: 32, 1>}, {pipeline_mode = #tpu.pipeline_mode<synchronous>, transform_indices = @transform_5, window_bounds = array<i64: 1, 32>}, {pipeline_mode = #tpu.pipeline_mode<synchronous>, transform_indices = @transform_6, window_bounds = array<i64: 1, 1>}, {transform_indices = @transform_7, window_bounds = array<i64: 1, 128>}]} {
    %c0 = arith.constant 0 : index
    %c0_0 = arith.constant 0 : index
    %0 = vector.load %arg2[%c0, %c0_0] : memref<32x16xbf16, #tpu.memory_space<vmem>>, vector<32x16xbf16>
    %c0_1 = arith.constant 0 : index
    %c0_2 = arith.constant 0 : index
    %1 = vector.load %arg1[%c0_1, %c0_2] : memref<16x128xbf16, #tpu.memory_space<vmem>>, vector<16x128xbf16>
    %cst = arith.constant dense<0.000000e+00> : vector<32x128xf32>
    %2 = tpu.matmul %0, %1, %cst {dimension_numbers = #tpu.dot_dimension_numbers<[1], [0], [0], [1], [0, 0, 1, 1], [], []>} : vector<32x16xbf16>, vector<16x128xbf16>, vector<32x128xf32> -> vector<32x128xf32>
    %c0_3 = arith.constant 0 : index
    %c0_4 = arith.constant 0 : index
    %3 = vector.load %arg3[%c0_3, %c0_4] : memref<32x1xf32, #tpu.memory_space<vmem>>, vector<32x1xf32>
    %4 = vector.broadcast %3 : vector<32x1xf32> to vector<32x128xf32>
    %5 = arith.addf %2, %4 : vector<32x128xf32>
    %cst_5 = arith.constant 0.000000e+00 : f32
    %6 = vector.broadcast %cst_5 : f32 to vector<32x128xf32>
    %7 = arith.maximumf %5, %6 : vector<32x128xf32>
    %8 = arith.truncf %7 : vector<32x128xf32> to vector<32x128xbf16>
    %c0_6 = arith.constant 0 : index
    %c0_7 = arith.constant 0 : index
    %9 = vector.load %arg4[%c0_6, %c0_7] : memref<32x32xbf16, #tpu.memory_space<vmem>>, vector<32x32xbf16>
    %cst_8 = arith.constant dense<0.000000e+00> : vector<32x128xf32>
    %10 = tpu.matmul %9, %8, %cst_8 {dimension_numbers = #tpu.dot_dimension_numbers<[1], [0], [0], [1], [0, 0, 1, 1], [], []>} : vector<32x32xbf16>, vector<32x128xbf16>, vector<32x128xf32> -> vector<32x128xf32>
    %c0_9 = arith.constant 0 : index
    %c0_10 = arith.constant 0 : index
    %11 = vector.load %arg5[%c0_9, %c0_10] : memref<32x1xf32, #tpu.memory_space<vmem>>, vector<32x1xf32>
    %12 = vector.broadcast %11 : vector<32x1xf32> to vector<32x128xf32>
    %13 = arith.addf %10, %12 : vector<32x128xf32>
    %cst_11 = arith.constant 0.000000e+00 : f32
    %14 = vector.broadcast %cst_11 : f32 to vector<32x128xf32>
    %15 = arith.maximumf %13, %14 : vector<32x128xf32>
    %16 = arith.truncf %15 : vector<32x128xf32> to vector<32x128xbf16>
    %c0_12 = arith.constant 0 : index
    %c0_13 = arith.constant 0 : index
    %17 = vector.load %arg6[%c0_12, %c0_13] : memref<1x32xbf16, #tpu.memory_space<vmem>>, vector<1x32xbf16>
    %cst_14 = arith.constant dense<0.000000e+00> : vector<1x128xf32>
    %18 = tpu.matmul %17, %16, %cst_14 {dimension_numbers = #tpu.dot_dimension_numbers<[1], [0], [0], [1], [0, 0, 1, 1], [], []>} : vector<1x32xbf16>, vector<32x128xbf16>, vector<1x128xf32> -> vector<1x128xf32>
    %c0_15 = arith.constant 0 : index
    %c0_16 = arith.constant 0 : index
    %19 = vector.load %arg7[%c0_15, %c0_16] : memref<1x1xf32, #tpu.memory_space<vmem>>, vector<1x1xf32>
    %20 = vector.broadcast %19 : vector<1x1xf32> to vector<1x128xf32>
    %21 = arith.addf %18, %20 : vector<1x128xf32>
    %c0_17 = arith.constant 0 : index
    %c0_18 = arith.constant 0 : index
    %22 = vector.load %arg8[%c0_17, %c0_18] : memref<1x128xf32, #tpu.memory_space<vmem>>, vector<1x128xf32>
    tpu.vector_store %arg8[%c0_17, %c0_18], %21 {strides = array<i32>} : memref<1x128xf32, #tpu.memory_space<vmem>>, vector<1x128xf32>,
    return
  }
  func.func @transform_0(%arg0: i32) -> (i32, i32) {
    %c0_i32 = arith.constant 0 : i32
    %c0_i32_0 = arith.constant 0 : i32
    return %c0_i32, %arg0 : i32, i32
  }
  func.func @transform_1(%arg0: i32) -> (i32, i32) {
    %c0_i32 = arith.constant 0 : i32
    %c0_i32_0 = arith.constant 0 : i32
    %c0_i32_1 = arith.constant 0 : i32
    return %c0_i32, %c0_i32_0 : i32, i32
  }
  func.func @transform_2(%arg0: i32) -> (i32, i32) {
    %c0_i32 = arith.constant 0 : i32
    %c0_i32_0 = arith.constant 0 : i32
    %c0_i32_1 = arith.constant 0 : i32
    return %c0_i32, %c0_i32_0 : i32, i32
  }
  func.func @transform_3(%arg0: i32) -> (i32, i32) {
    %c0_i32 = arith.constant 0 : i32
    %c0_i32_0 = arith.constant 0 : i32
    %c0_i32_1 = arith.constant 0 : i32
    return %c0_i32, %c0_i32_0 : i32, i32
  }
  func.func @transform_4(%arg0: i32) -> (i32, i32) {
    %c0_i32 = arith.constant 0 : i32
    %c0_i32_0 = arith.constant 0 : i32
    %c0_i32_1 = arith.constant 0 : i32
    return %c0_i32, %c0_i32_0 : i32, i32
  }
  func.func @transform_5(%arg0: i32) -> (i32, i32) {
    %c0_i32 = arith.constant 0 : i32
    %c0_i32_0 = arith.constant 0 : i32
    %c0_i32_1 = arith.constant 0 : i32
    return %c0_i32, %c0_i32_0 : i32, i32
  }
  func.func @transform_6(%arg0: i32) -> (i32, i32) {
    %c0_i32 = arith.constant 0 : i32
    %c0_i32_0 = arith.constant 0 : i32
    %c0_i32_1 = arith.constant 0 : i32
    return %c0_i32, %c0_i32_0 : i32, i32
  }
  func.func @transform_7(%arg0: i32) -> (i32, i32) {
    %c0_i32 = arith.constant 0 : i32
    %c0_i32_0 = arith.constant 0 : i32
    return %c0_i32, %arg0 : i32, i32
  }
}

</mosaic_0001>

<llo_original>
// kernel: forward_folded.1
$region0: #{forward_folded.1}
  #allocation0 [shape = 'u32[]', space=smem, size = 0x4, offset = 0x4, fixed_abs, tag = 'smem constant byte address 0x4 - core index']
  #allocation1 [shape = 'u32[144,128]{1,0:T(1,128)}', space=vmem, size = 0x12000, scoped, tag = 'internal scratch']
  #allocation2 [shape = 'f32[1,1]{1,0:T(1,128)S(1)}', space=vmem, size = 0x200, scoped, tag = 'scoped memory for forward_folded.1']
  %s0 = inlined_call_operand.vmem [shape: bf16[16,128], index: 0, kind: input, shape index: {}]
  %s1 = inlined_call_operand.vmem [shape: bf16[32,16], index: 1, kind: input, shape index: {}]
  %s2 = inlined_call_operand.vmem [shape: f32[32,1], index: 2, kind: input, shape index: {}]
  %s3 = inlined_call_operand.vmem [shape: bf16[32,32], index: 3, kind: input, shape index: {}]
  %s4 = inlined_call_operand.vmem [shape: f32[32,1], index: 4, kind: input, shape index: {}]
  %s5 = inlined_call_operand.vmem [shape: bf16[1,32], index: 5, kind: input, shape index: {}]
  %s6 = inlined_call_operand.<no memory space> [shape: f32[1,1], index: 6, kind: input, shape index: {}]
  %s7 = inlined_call_operand.vmem [shape: f32[1,128], index: 7, kind: output, shape index: {}]
  %s8 = sld [smem:[#allocation0]]
  $region38: #{forward_folded.1} parent=0
    _
  %s10 = ssub.s32 1, %s8
  %s11 = scalar_select 0, %s10, %s8
  %v12 = vstv %s6
  %13 = vst [vmem:[#allocation2] sm:$0x1] %v12
  // Predicated region
  $region2: #{forward_folded.1} parent=0 // pred_check
    _
  $region3: #{forward_folded.1} parent=0 // pred_check_branch
    %15 = sbr.rel (0) target = $region5
  $region4: #{forward_folded.1} parent=0 // pred_region
    _
  $region5: #{forward_folded.1} parent=0 // pred_fallthru
    _
  // Predicated region
  $region6: #{forward_folded.1} parent=0 // pred_check
    _
  $region7: #{forward_folded.1} parent=0 // pred_check_branch
    %17 = sbr.rel (0) target = $region9
  $region8: #{forward_folded.1} parent=0 // pred_region
    _
  $region9: #{forward_folded.1} parent=0 // pred_fallthru
    _
  // Predicated region
  $region10: #{forward_folded.1} parent=0 // pred_check
    _
  $region11: #{forward_folded.1} parent=0 // pred_check_branch
    %19 = sbr.rel (0) target = $region13
  $region12: #{forward_folded.1} parent=0 // pred_region
    _
  $region13: #{forward_folded.1} parent=0 // pred_fallthru
    _
  // Predicated region
  $region14: #{forward_folded.1} parent=0 // pred_check
    _
  $region15: #{forward_folded.1} parent=0 // pred_check_branch
    %21 = sbr.rel (0) target = $region17
  $region16: #{forward_folded.1} parent=0 // pred_region
    _
  $region17: #{forward_folded.1} parent=0 // pred_fallthru
    _
  // Predicated region
  $region18: #{forward_folded.1} parent=0 // pred_check
    _
  $region19: #{forward_folded.1} parent=0 // pred_check_branch
    %23 = sbr.rel (0) target = $region21
  $region20: #{forward_folded.1} parent=0 // pred_region
    _
  $region21: #{forward_folded.1} parent=0 // pred_fallthru
    _
  // Predicated region
  $region22: #{forward_folded.1} parent=0 // pred_check
    _
  $region23: #{forward_folded.1} parent=0 // pred_check_branch
    %25 = sbr.rel (0) target = $region25
  $region24: #{forward_folded.1} parent=0 // pred_region
    _
  $region25: #{forward_folded.1} parent=0 // pred_fallthru
    _
  // Predicated region
  $region26: #{forward_folded.1} parent=0 // pred_check
    _
  $region27: #{forward_folded.1} parent=0 // pred_check_branch
    %27 = sbr.rel (0) target = $region29
  $region28: #{forward_folded.1} parent=0 // pred_region
    _
  $region29: #{forward_folded.1} parent=0 // pred_fallthru
    _
  %v29 = vld [vmem:[%s1] sm:$0xf]
  %v30 = vld [vmem:[%s1 + $0x4] sm:$0xf]
  %v31 = vld [vmem:[%s1 + $0x8] sm:$0xf]
  %v32 = vld [vmem:[%s1 + $0xc] sm:$0xf]
  %v33 = vld [vmem:[%s0] sm:$0xf]
  %v34 = vld [vmem:[%s0 + $0x4] sm:$0xf]
  %v35 = vld [vmem:[%s2] sm:$0xff]
  %v36 = vld [vmem:[%s2 + $0x8] sm:$0xff]
  %v37 = vld [vmem:[%s2 + $0x10] sm:$0xff]
  %v38 = vld [vmem:[%s2 + $0x18] sm:$0xff]
  %40 = vset.pattern.permute.xlu0 0
  %41 = vperm.xlu0 %40, %v35
  %v42 = vpop.permute.xlu0 %41
  %45 = vset.pattern.permute.xlu0 0
  %46 = vperm.xlu0 %45, %v36
  %v47 = vpop.permute.xlu0 %46
  %50 = vset.pattern.permute.xlu0 0
  %51 = vperm.xlu0 %50, %v37
  %v52 = vpop.permute.xlu0 %51
  %55 = vset.pattern.permute.xlu0 0
  %56 = vperm.xlu0 %55, %v38
  %v57 = vpop.permute.xlu0 %56
  %v63 = vunpack.c.l.b16 %v29
  %v64 = vunpack.c.l.b16 %v30
  %v65 = vunpack.c.l.b16 %v31
  %v66 = vunpack.c.l.b16 %v32
  %v67 = vpack.c.b16 %v64, %v63
  %v68 = vpack.c.b16 %v66, %v65
  %v71 = vunpack.c.l.b16 %v33
  %v72 = vunpack.c.l.b16 %v34
  %v73 = vpack.c.b16 %v72, %v71
  %vm75 = vcmask 130048
  %v77 = vsel %vm75, %v67, 0
  %v80 = vsel %vm75, %v68, 0
  %82 = vmatprep.subr.bf16.mxu0 0
  %83 = vmatpush1.bf16.msra.mxu0 %v73
  %84 = vmatprep.subr.bf16.mxu0 0
  %85 = vmatpush1.bf16.msra.mxu0 0
  %86 = vmatprep.subr.bf16.mxu0 0
  %87 = vmatpush1.bf16.msra.mxu0 0
  %88 = vmatprep.subr.bf16.mxu0 0
  %89 = vmatpush1.bf16.msra.mxu0 0
  %90 = vmatprep.subr.bf16.mxu0 0
  %91 = vmatpush1.bf16.msra.mxu0 0
  %92 = vmatprep.subr.bf16.mxu0 0
  %93 = vmatpush1.bf16.msra.mxu0 0
  %94 = vmatprep.subr.bf16.mxu0 0
  %95 = vmatpush1.bf16.msra.mxu0 0
  %96 = vmatprep.subr.bf16.mxu0 0
  %97 = vmatpush1.bf16.msra.mxu0 0
  %98 = vmatprep.subr.bf16.mxu0 0
  %99 = vmatpush1.bf16.msra.mxu0 0
  %100 = vmatprep.subr.bf16.mxu0 0
  %101 = vmatpush1.bf16.msra.mxu0 0
  %102 = vmatprep.subr.bf16.mxu0 0
  %103 = vmatpush1.bf16.msra.mxu0 0
  %104 = vmatprep.subr.bf16.mxu0 0
  %105 = vmatpush1.bf16.msra.mxu0 0
  %106 = vmatprep.subr.bf16.mxu0 0
  %107 = vmatpush1.bf16.msra.mxu0 0
  %108 = vmatprep.subr.bf16.mxu0 0
  %109 = vmatpush1.bf16.msra.mxu0 0
  %110 = vmatprep.subr.bf16.mxu0 0
  %111 = vmatpush1.bf16.msra.mxu0 0
  %112 = vmatprep.subr.bf16.mxu0 0
  %113 = vmatpush1.bf16.msra.mxu0 0
  %114 = vmatprep.mubr.bf16.mxu0 0
  %115 = vmatmul.mubr.bf16.gmra.mrb[0].mxu0 %v77
  %v116 = vpop.f32.mrb[0].mxu0
  %v117 = vadd.f32 %v42, %v116
  %v118 = vpop.f32.mrb[0].mxu0
  %v119 = vpop.f32.mrb[0].mxu0
  %v120 = vadd.f32 %v47, %v119
  %v121 = vpop.f32.mrb[0].mxu0
  %122 = vmatprep.mubr.bf16.mxu0 0
  %123 = vmatmul.mubr.bf16.gmra.mrb[0].mxu0 %v80
  %v124 = vpop.f32.mrb[0].mxu0
  %v125 = vadd.f32 %v52, %v124
  %v126 = vpop.f32.mrb[0].mxu0
  %v127 = vpop.f32.mrb[0].mxu0
  %v128 = vadd.f32 %v57, %v127
  %v129 = vpop.f32.mrb[0].mxu0
  %130 = vdwg.mxu0
  %v131 = vmax.f32 %v117, 0.0
  %v132 = vmax.f32 %v120, 0.0
  %v133 = vmax.f32 %v125, 0.0
  %v134 = vmax.f32 %v128, 0.0
  %v135 = vpack.c.bf16 %v132, %v131
  %v136 = vpack.c.bf16 %v134, %v133
  %v137 = vld [vmem:[%s3] sm:$0xf]
  %v138 = vld [vmem:[%s3 + $0x4] sm:$0xf]
  %v139 = vld [vmem:[%s3 + $0x8] sm:$0xf]
  %v140 = vld [vmem:[%s3 + $0xc] sm:$0xf]
  %v141 = vld [vmem:[%s4] sm:$0xff]
  %v142 = vld [vmem:[%s4 + $0x8] sm:$0xff]
  %v143 = vld [vmem:[%s4 + $0x10] sm:$0xff]
  %v144 = vld [vmem:[%s4 + $0x18] sm:$0xff]
  %146 = vset.pattern.permute.xlu0 0
  %147 = vperm.xlu0 %146, %v141
  %v148 = vpop.permute.xlu0 %147
  %151 = vset.pattern.permute.xlu0 0
  %152 = vperm.xlu0 %151, %v142
  %v153 = vpop.permute.xlu0 %152
  %156 = vset.pattern.permute.xlu0 0
  %157 = vperm.xlu0 %156, %v143
  %v158 = vpop.permute.xlu0 %157
  %161 = vset.pattern.permute.xlu0 0
  %162 = vperm.xlu0 %161, %v144
  %v163 = vpop.permute.xlu0 %162
  %v169 = vunpack.c.l.b16 %v137
  %v170 = vunpack.c.l.b16 %v138
  %v171 = vunpack.c.l.b16 %v139
  %v172 = vunpack.c.l.b16 %v140
  %v173 = vpack.c.b16 %v170, %v169
  %v174 = vpack.c.b16 %v172, %v171
  %vm175 = vcmask 261120
  %v177 = vsel %vm175, %v173, 0
  %v180 = vsel %vm175, %v174, 0
  %182 = vmatprep.subr.bf16.mxu0 0
  %183 = vmatpush1.bf16.msra.mxu0 %v135
  %184 = vmatprep.subr.bf16.mxu0 0
  %185 = vmatpush1.bf16.msra.mxu0 %v136
  %186 = vmatprep.subr.bf16.mxu0 0
  %187 = vmatpush1.bf16.msra.mxu0 0
  %188 = vmatprep.subr.bf16.mxu0 0
  %189 = vmatpush1.bf16.msra.mxu0 0
  %190 = vmatprep.subr.bf16.mxu0 0
  %191 = vmatpush1.bf16.msra.mxu0 0
  %192 = vmatprep.subr.bf16.mxu0 0
  %193 = vmatpush1.bf16.msra.mxu0 0
  %194 = vmatprep.subr.bf16.mxu0 0
  %195 = vmatpush1.bf16.msra.mxu0 0
  %196 = vmatprep.subr.bf16.mxu0 0
  %197 = vmatpush1.bf16.msra.mxu0 0
  %198 = vmatprep.subr.bf16.mxu0 0
  %199 = vmatpush1.bf16.msra.mxu0 0
  %200 = vmatprep.subr.bf16.mxu0 0
  %201 = vmatpush1.bf16.msra.mxu0 0
  %202 = vmatprep.subr.bf16.mxu0 0
  %203 = vmatpush1.bf16.msra.mxu0 0
  %204 = vmatprep.subr.bf16.mxu0 0
  %205 = vmatpush1.bf16.msra.mxu0 0
  %206 = vmatprep.subr.bf16.mxu0 0
  %207 = vmatpush1.bf16.msra.mxu0 0
  %208 = vmatprep.subr.bf16.mxu0 0
  %209 = vmatpush1.bf16.msra.mxu0 0
  %210 = vmatprep.subr.bf16.mxu0 0
  %211 = vmatpush1.bf16.msra.mxu0 0
  %212 = vmatprep.subr.bf16.mxu0 0
  %213 = vmatpush1.bf16.msra.mxu0 0
  %214 = vmatprep.mubr.bf16.mxu0 0
  %215 = vmatmul.mubr.bf16.gmra.mrb[0].mxu0 %v177
  %v216 = vpop.f32.mrb[0].mxu0
  %v217 = vadd.f32 %v148, %v216
  %v218 = vpop.f32.mrb[0].mxu0
  %v219 = vpop.f32.mrb[0].mxu0
  %v220 = vadd.f32 %v153, %v219
  %v221 = vpop.f32.mrb[0].mxu0
  %222 = vmatprep.mubr.bf16.mxu0 0
  %223 = vmatmul.mubr.bf16.gmra.mrb[0].mxu0 %v180
  %v224 = vpop.f32.mrb[0].mxu0
  %v225 = vadd.f32 %v158, %v224
  %v226 = vpop.f32.mrb[0].mxu0
  %v227 = vpop.f32.mrb[0].mxu0
  %v228 = vadd.f32 %v163, %v227
  %v229 = vpop.f32.mrb[0].mxu0
  %230 = vdwg.mxu0
  %v231 = vmax.f32 %v217, 0.0
  %v232 = vmax.f32 %v220, 0.0
  %v233 = vmax.f32 %v225, 0.0
  %v234 = vmax.f32 %v228, 0.0
  %v235 = vpack.c.bf16 %v232, %v231
  %v236 = vpack.c.bf16 %v234, %v233
  %v237 = vld [vmem:[%s5] sm:$0x1]
  %v238 = vld [vmem:[#allocation2] sm:$0x1]
  %240 = vset.pattern.permute.xlu0 0
  %241 = vperm.xlu0 %240, %v238
  %v242 = vpop.permute.xlu0 %241
  %v244 = vlaneseq
  %v245 = vshrl.u32 %v244, 7
  %v246 = vsub.s32 0, %v245
  %v247 = vrot.slane %v242, %v246
  %v249 = vsel %vm175, %v237, 0
  %251 = vmatprep.subr.bf16.mxu0 0
  %252 = vmatpush1.bf16.msra.mxu0 %v235
  %253 = vmatprep.subr.bf16.mxu0 0
  %254 = vmatpush1.bf16.msra.mxu0 %v236
  %255 = vmatprep.subr.bf16.mxu0 0
  %256 = vmatpush1.bf16.msra.mxu0 0
  %257 = vmatprep.subr.bf16.mxu0 0
  %258 = vmatpush1.bf16.msra.mxu0 0
  %259 = vmatprep.subr.bf16.mxu0 0
  %260 = vmatpush1.bf16.msra.mxu0 0
  %261 = vmatprep.subr.bf16.mxu0 0
  %262 = vmatpush1.bf16.msra.mxu0 0
  %263 = vmatprep.subr.bf16.mxu0 0
  %264 = vmatpush1.bf16.msra.mxu0 0
  %265 = vmatprep.subr.bf16.mxu0 0
  %266 = vmatpush1.bf16.msra.mxu0 0
  %267 = vmatprep.subr.bf16.mxu0 0
  %268 = vmatpush1.bf16.msra.mxu0 0
  %269 = vmatprep.subr.bf16.mxu0 0
  %270 = vmatpush1.bf16.msra.mxu0 0
  %271 = vmatprep.subr.bf16.mxu0 0
  %272 = vmatpush1.bf16.msra.mxu0 0
  %273 = vmatprep.subr.bf16.mxu0 0
  %274 = vmatpush1.bf16.msra.mxu0 0
  %275 = vmatprep.subr.bf16.mxu0 0
  %276 = vmatpush1.bf16.msra.mxu0 0
  %277 = vmatprep.subr.bf16.mxu0 0
  %278 = vmatpush1.bf16.msra.mxu0 0
  %279 = vmatprep.subr.bf16.mxu0 0
  %280 = vmatpush1.bf16.msra.mxu0 0
  %281 = vmatprep.subr.bf16.mxu0 0
  %282 = vmatpush1.bf16.msra.mxu0 0
  %283 = vmatprep.mubr.bf16.mxu0 0
  %284 = vmatmul.mubr.bf16.gmra.mrb[0].mxu0 %v249
  %v285 = vpop.f32.mrb[0].mxu0
  %v286 = vadd.f32 %v247, %v285
  %v287 = vpop.f32.mrb[0].mxu0
  %v288 = vpop.f32.mrb[0].mxu0
  %v289 = vpop.f32.mrb[0].mxu0
  %290 = vdwg.mxu0
  %291 = vst [vmem:[%s7] sm:$0x1] %v286
  // Predicated region
  $region30: #{forward_folded.1} parent=0 // pred_check
    _
  $region31: #{forward_folded.1} parent=0 // pred_check_branch
    %293 = sbr.rel (0) target = $region33
  $region32: #{forward_folded.1} parent=0 // pred_region
    _
  $region33: #{forward_folded.1} parent=0 // pred_fallthru
    _
  // Predicated region
  $region34: #{forward_folded.1} parent=0 // pred_check
    _
  $region35: #{forward_folded.1} parent=0 // pred_check_branch
    %295 = sbr.rel (0) target = $region37
  $region36: #{forward_folded.1} parent=0 // pred_region
    _
  $region37: #{forward_folded.1} parent=0 // pred_fallthru
    _

</llo_original>
